<compile_context>
chip_gen: v5e
topology: v5e:2x2
jax: 0.10.0
libtpu: 0.0.40
codegen_flags: <defaults>
</compile_context>

<pallas_src>
import functools

import jax
import jax.numpy as jnp
from jax.experimental import pallas as pl
from jax.experimental.pallas import tpu as pltpu

# Edge-detection (Laplacian) weight from the reference script.
EDGE_WEIGHT = jnp.array(
    [[-1.0, -1.0, -1.0],
     [-1.0,  8.0, -1.0],
     [-1.0, -1.0, -1.0]], dtype=jnp.float32)

_LANE = 128        # lane tiling of the last dim
_SUBLANE = 8       # sublane tiling of the second-minor dim
_HALO = _SUBLANE   # halo rows DMA'd below each row tile (covers u - 1 <= 8)


def _round_up(n, m):
    return ((n + m - 1) // m) * m


def _conv2d_kernel(w_ref, x_ref, halo_ref, o_ref, *, u, v, out_w):
    """One (batch, row-tile) grid step of the dense (stride=1) conv.

    w_ref:    (u*v,) f32 taps in SMEM.
    x_ref:    (1, TILE_H, W_in)  rows [h*TILE_H, h*TILE_H + TILE_H).
    halo_ref: (1, HALO, W_in)    the 8 rows just below the tile.
    o_ref:    (1, TILE_H, out_w) dense conv rows for this tile (lane-dense).
    """
    tile_h = o_ref.shape[1]
    x = jnp.concatenate([x_ref[0], halo_ref[0]], axis=0)   # (TILE_H+HALO, W_in)
    acc = jnp.zeros((tile_h, out_w), jnp.float32)
    # Fully unrolled small-filter taps.  Static shifted slices (sublane/lane
    # shifts inside VMEM); accumulation in f32; one aligned store at the end.
    for di in range(u):
        for dj in range(v):
            window = x[di:di + tile_h, dj:dj + out_w]
            acc = acc + w_ref[di * v + dj] * window.astype(jnp.float32)
    o_ref[0] = acc.astype(o_ref.dtype)


def conv2d_pallas(x, weight=EDGE_WEIGHT, stride=1, padding=0, *, row_tile=None):
    """Matches Conv2D.forward: x [B, M, N] -> [B, OH, OW]."""
    x = jnp.asarray(x)
    weight = jnp.asarray(weight, dtype=jnp.float32)
    if x.ndim != 3:
        raise ValueError(f"expected x of rank 3 [B, M, N], got {x.shape}")
    B, M, N = x.shape
    u, v = weight.shape
    if u - 1 > _HALO:
        raise ValueError(f"filter height {u} too large for halo of {_HALO} rows")
    if stride < 1:
        raise ValueError("stride must be >= 1")

    Mp = M + 2 * padding
    Np = N + 2 * padding
    out_h = (Mp - u) // stride + 1
    out_w = (Np - v) // stride + 1
    if out_h < 1 or out_w < 1:
        raise ValueError("filter larger than (padded) input")

    # Dense (stride=1) output extents computed by the kernel.
    oh_dense = Mp - u + 1
    ow_dense = Np - v + 1

    # Lane-dense output width (unmasked vst); input width carries the column
    # halo (v-1 extra cols) rounded up to the next lane block.
    W_out = max(_round_up(ow_dense, _LANE), _LANE)
    W_in = max(_round_up(W_out + v - 1, _LANE), _LANE)

    # Row tile: ~2 MiB input blocks (v7x 64 MiB VMEM safe; bigger parts have
    # headroom).  Must be a multiple of the sublane/halo granularity (8).
    itemsize = x.dtype.itemsize
    if row_tile is not None:
        tile_h = max(_SUBLANE, _round_up(int(row_tile), _SUBLANE))
    else:
        target_bytes = 2 * 1024 * 1024
        tile_h = (target_bytes // (W_in * itemsize)) // _SUBLANE * _SUBLANE
        tile_h = max(_SUBLANE, min(tile_h, _round_up(oh_dense, _SUBLANE)))
    n_h = pl.cdiv(oh_dense, tile_h)
    halo_blocks_per_tile = tile_h // _HALO

    # Pad once so every block (main tile, halo block, output tile) is fully in
    # bounds.  The conv zero-padding and the alignment padding share one pad op.
    # TODO(synk): fold the zero-padding into the kernel with edge masks so
    # padding > 0 / alignment does not cost an extra HBM pass over the input.
    rows_padded = n_h * tile_h + _HALO
    pad_bottom = rows_padded - M - padding
    pad_right = W_in - N - padding
    x_p = jnp.pad(x, ((0, 0), (padding, pad_bottom), (padding, pad_right)))

    kernel = functools.partial(_conv2d_kernel, u=u, v=v, out_w=W_out)

    cost = pl.CostEstimate(
        flops=2 * B * oh_dense * ow_dense * u * v,
        transcendentals=0,
        bytes_accessed=B * rows_padded * W_in * itemsize
        + B * n_h * tile_h * W_out * itemsize,
    )

    dense = pl.pallas_call(
        kernel,
        out_shape=jax.ShapeDtypeStruct((B, n_h * tile_h, W_out), x.dtype),
        grid=(B, n_h),
        in_specs=[
            pl.BlockSpec(memory_space=pltpu.MemorySpace.SMEM),        # (u*v,) taps
            pl.BlockSpec((1, tile_h, W_in), lambda b, h: (b, h, 0)),  # row tile
            pl.BlockSpec((1, _HALO, W_in),                             # halo rows
                         lambda b, h: (b, (h + 1) * halo_blocks_per_tile, 0)),
        ],
        out_specs=pl.BlockSpec((1, tile_h, W_out), lambda b, h: (b, h, 0)),
        compiler_params=pltpu.CompilerParams(
            dimension_semantics=("parallel", "parallel"),
            vmem_limit_bytes=64 * 1024 * 1024),
        cost_estimate=cost,
    )(weight.reshape(-1), x_p, x_p)

    # Trim row/lane padding; decimate for stride > 1 (kept out of the kernel so
    # the lane axis stays contiguous on the VPU path).
    out = dense[:, :oh_dense, :ow_dense]
    if stride > 1:
        out = out[:, ::stride, ::stride]
    assert out.shape == (B, out_h, out_w), (out.shape, (B, out_h, out_w))
    return out


def conv2d_ref(x, weight=EDGE_WEIGHT, stride=1, padding=0):
    """Pure-JAX reference identical to the PyTorch loop semantics."""
    x = jnp.asarray(x)
    weight = jnp.asarray(weight, dtype=jnp.float32)
    if padding > 0:
        x = jnp.pad(x, ((0, 0), (padding, padding), (padding, padding)))
    B, Mp, Np = x.shape
    u, v = weight.shape
    out_h = (Mp - u) // stride + 1
    out_w = (Np - v) // stride + 1
    out = jnp.zeros((B, out_h, out_w), jnp.float32)
    for di in range(u):
        for dj in range(v):
            region = x[:,
                       di:di + (out_h - 1) * stride + 1:stride,
                       dj:dj + (out_w - 1) * stride + 1:stride]
            out = out + weight[di, dj] * region
    return out.astype(x.dtype)


if __name__ == "__main__":
    key = jax.random.PRNGKey(0)
    B, M, N = 2, 16, 16
    x = jax.random.normal(key, (B, M, N), dtype=jnp.float32)

    out = conv2d_pallas(x, EDGE_WEIGHT, stride=1, padding=0)
    out = jax.block_until_ready(out)

    ref = conv2d_ref(x, EDGE_WEIGHT, stride=1, padding=0)
    assert out.shape == (B, M - 2, N - 2), out.shape
    assert jnp.allclose(out, ref, atol=1e-5, rtol=1e-5), \
        float(jnp.max(jnp.abs(out - ref)))

    # Second check: padding=1, lane padding, multiple row tiles (halo path).
    x2 = jax.random.normal(jax.random.PRNGKey(1), (2, 64, 256), dtype=jnp.float32)
    out2 = jax.block_until_ready(
        conv2d_pallas(x2, EDGE_WEIGHT, stride=1, padding=1, row_tile=16))
    ref2 = conv2d_ref(x2, EDGE_WEIGHT, stride=1, padding=1)
    assert out2.shape == ref2.shape, (out2.shape, ref2.shape)
    assert jnp.allclose(out2, ref2, atol=1e-5, rtol=1e-5), \
        float(jnp.max(jnp.abs(out2 - ref2)))

    # Third check: stride > 1 with padding (wrapper-side decimation).
    x3 = jax.random.normal(jax.random.PRNGKey(2), (2, 33, 40), dtype=jnp.float32)
    out3 = jax.block_until_ready(
        conv2d_pallas(x3, EDGE_WEIGHT, stride=2, padding=1, row_tile=8))
    ref3 = conv2d_ref(x3, EDGE_WEIGHT, stride=2, padding=1)
    assert out3.shape == ref3.shape, (out3.shape, ref3.shape)
    assert jnp.allclose(out3, ref3, atol=1e-5, rtol=1e-5), \
        float(jnp.max(jnp.abs(out3 - ref3)))

    print("KERNEL_OK")
</pallas_src>

<mosaic_0001>
module attributes {stable_mosaic.version = 11 : i64} {
  func.func @_conv2d_kernel(%arg0: i32, %arg1: i32, %arg2: memref<9xf32, #tpu.memory_space<smem>>, %arg3: memref<1x16x256xf32, #tpu.memory_space<vmem>>, %arg4: memref<1x8x256xf32, #tpu.memory_space<vmem>>, %arg5: memref<1x16x128xf32, #tpu.memory_space<vmem>>) attributes {dimension_semantics = [#tpu.dimension_semantics<parallel>, #tpu.dimension_semantics<parallel>], iteration_bounds = array<i64: 2, 1>, scalar_prefetch = 0 : i64, scratch_operands = 0 : i64, tpu.core_type = #tpu.core_type<tc>, window_params = [{transform_indices = @transform_0, window_bounds = array<i64: 9>}, {transform_indices = @transform_1, window_bounds = array<i64: 1, 16, 256>}, {transform_indices = @transform_2, window_bounds = array<i64: 1, 8, 256>}, {transform_indices = @transform_3, window_bounds = array<i64: 1, 16, 128>}]} {
    %c0 = arith.constant 0 : index
    %c0_0 = arith.constant 0 : index
    %c0_1 = arith.constant 0 : index
    %0 = vector.load %arg3[%c0, %c0_0, %c0_1] : memref<1x16x256xf32, #tpu.memory_space<vmem>>, vector<1x16x256xf32>
    %1 = vector.shape_cast %0 : vector<1x16x256xf32> to vector<16x256xf32>
    %c0_2 = arith.constant 0 : index
    %c0_3 = arith.constant 0 : index
    %c0_4 = arith.constant 0 : index
    %2 = vector.load %arg4[%c0_2, %c0_3, %c0_4] : memref<1x8x256xf32, #tpu.memory_space<vmem>>, vector<1x8x256xf32>
    %3 = vector.shape_cast %2 : vector<1x8x256xf32> to vector<8x256xf32>
    %4 = tpu.concatenate %1, %3 in 0 : vector<16x256xf32>, vector<8x256xf32> -> vector<24x256xf32>
    %cst = arith.constant 0.000000e+00 : f32
    %5 = vector.broadcast %cst : f32 to vector<16x128xf32>
    %6 = vector.extract_strided_slice %4 {offsets = [0, 0], sizes = [16, 128], strides = [1, 1]} : vector<24x256xf32> to vector<16x128xf32>
    %c0_5 = arith.constant 0 : index
    %7 = memref.load %arg2[%c0_5] : memref<9xf32, #tpu.memory_space<smem>>
    %8 = vector.broadcast %7 : f32 to vector<16x128xf32>
    %9 = arith.mulf %8, %6 : vector<16x128xf32>
    %10 = arith.addf %5, %9 : vector<16x128xf32>
    %11 = vector.extract_strided_slice %4 {offsets = [0, 1], sizes = [16, 128], strides = [1, 1]} : vector<24x256xf32> to vector<16x128xf32>
    %c1 = arith.constant 1 : index
    %12 = memref.load %arg2[%c1] : memref<9xf32, #tpu.memory_space<smem>>
    %13 = vector.broadcast %12 : f32 to vector<16x128xf32>
    %14 = arith.mulf %13, %11 : vector<16x128xf32>
    %15 = arith.addf %10, %14 : vector<16x128xf32>
    %16 = vector.extract_strided_slice %4 {offsets = [0, 2], sizes = [16, 128], strides = [1, 1]} : vector<24x256xf32> to vector<16x128xf32>
    %c2 = arith.constant 2 : index
    %17 = memref.load %arg2[%c2] : memref<9xf32, #tpu.memory_space<smem>>
    %18 = vector.broadcast %17 : f32 to vector<16x128xf32>
    %19 = arith.mulf %18, %16 : vector<16x128xf32>
    %20 = arith.addf %15, %19 : vector<16x128xf32>
    %21 = vector.extract_strided_slice %4 {offsets = [1, 0], sizes = [16, 128], strides = [1, 1]} : vector<24x256xf32> to vector<16x128xf32>
    %c3 = arith.constant 3 : index
    %22 = memref.load %arg2[%c3] : memref<9xf32, #tpu.memory_space<smem>>
    %23 = vector.broadcast %22 : f32 to vector<16x128xf32>
    %24 = arith.mulf %23, %21 : vector<16x128xf32>
    %25 = arith.addf %20, %24 : vector<16x128xf32>
    %26 = vector.extract_strided_slice %4 {offsets = [1, 1], sizes = [16, 128], strides = [1, 1]} : vector<24x256xf32> to vector<16x128xf32>
    %c4 = arith.constant 4 : index
    %27 = memref.load %arg2[%c4] : memref<9xf32, #tpu.memory_space<smem>>
    %28 = vector.broadcast %27 : f32 to vector<16x128xf32>
    %29 = arith.mulf %28, %26 : vector<16x128xf32>
    %30 = arith.addf %25, %29 : vector<16x128xf32>
    %31 = vector.extract_strided_slice %4 {offsets = [1, 2], sizes = [16, 128], strides = [1, 1]} : vector<24x256xf32> to vector<16x128xf32>
    %c5 = arith.constant 5 : index
    %32 = memref.load %arg2[%c5] : memref<9xf32, #tpu.memory_space<smem>>
    %33 = vector.broadcast %32 : f32 to vector<16x128xf32>
    %34 = arith.mulf %33, %31 : vector<16x128xf32>
    %35 = arith.addf %30, %34 : vector<16x128xf32>
    %36 = vector.extract_strided_slice %4 {offsets = [2, 0], sizes = [16, 128], strides = [1, 1]} : vector<24x256xf32> to vector<16x128xf32>
    %c6 = arith.constant 6 : index
    %37 = memref.load %arg2[%c6] : memref<9xf32, #tpu.memory_space<smem>>
    %38 = vector.broadcast %37 : f32 to vector<16x128xf32>
    %39 = arith.mulf %38, %36 : vector<16x128xf32>
    %40 = arith.addf %35, %39 : vector<16x128xf32>
    %41 = vector.extract_strided_slice %4 {offsets = [2, 1], sizes = [16, 128], strides = [1, 1]} : vector<24x256xf32> to vector<16x128xf32>
    %c7 = arith.constant 7 : index
    %42 = memref.load %arg2[%c7] : memref<9xf32, #tpu.memory_space<smem>>
    %43 = vector.broadcast %42 : f32 to vector<16x128xf32>
    %44 = arith.mulf %43, %41 : vector<16x128xf32>
    %45 = arith.addf %40, %44 : vector<16x128xf32>
    %46 = vector.extract_strided_slice %4 {offsets = [2, 2], sizes = [16, 128], strides = [1, 1]} : vector<24x256xf32> to vector<16x128xf32>
    %c8 = arith.constant 8 : index
    %47 = memref.load %arg2[%c8] : memref<9xf32, #tpu.memory_space<smem>>
    %48 = vector.broadcast %47 : f32 to vector<16x128xf32>
    %49 = arith.mulf %48, %46 : vector<16x128xf32>
    %50 = arith.addf %45, %49 : vector<16x128xf32>
    %c0_6 = arith.constant 0 : index
    %c0_7 = arith.constant 0 : index
    %c0_8 = arith.constant 0 : index
    %51 = vector.load %arg5[%c0_6, %c0_7, %c0_8] : memref<1x16x128xf32, #tpu.memory_space<vmem>>, vector<1x16x128xf32>
    %52 = vector.shape_cast %51 : vector<1x16x128xf32> to vector<16x128xf32>
    %53 = vector.shape_cast %50 : vector<16x128xf32> to vector<1x16x128xf32>
    tpu.vector_store %arg5[%c0_6, %c0_7, %c0_8], %53 {strides = array<i32>} : memref<1x16x128xf32, #tpu.memory_space<vmem>>, vector<1x16x128xf32>,
    return
  }
  func.func @transform_0(%arg0: i32, %arg1: i32) -> i32 {
    %c0_i32 = arith.constant 0 : i32
    %c0_i32_0 = arith.constant 0 : i32
    return %c0_i32 : i32
  }
  func.func @transform_1(%arg0: i32, %arg1: i32) -> (i32, i32, i32) {
    %c0_i32 = arith.constant 0 : i32
    %c0_i32_0 = arith.constant 0 : i32
    return %arg0, %arg1, %c0_i32 : i32, i32, i32
  }
  func.func @transform_2(%arg0: i32, %arg1: i32) -> (i32, i32, i32) {
    %c1_i32 = arith.constant 1 : i32
    %0 = arith.addi %arg1, %c1_i32 : i32
    %c2_i32 = arith.constant 2 : i32
    %1 = arith.muli %0, %c2_i32 : i32
    %c0_i32 = arith.constant 0 : i32
    %c0_i32_0 = arith.constant 0 : i32
    return %arg0, %1, %c0_i32 : i32, i32, i32
  }
  func.func @transform_3(%arg0: i32, %arg1: i32) -> (i32, i32, i32) {
    %c0_i32 = arith.constant 0 : i32
    %c0_i32_0 = arith.constant 0 : i32
    return %arg0, %arg1, %c0_i32 : i32, i32, i32
  }
}

</mosaic_0001>

<llo_original>
// kernel: tpu_custom_call.1
$region0: #{tpu_custom_call.1}
  #allocation0 [shape = 'u32[]', space=smem, size = 0x4, offset = 0x4, fixed_abs, tag = 'smem constant byte address 0x4 - core index']
  #allocation1 [shape = 'u32[72,128]{1,0:T(1,128)}', space=vmem, size = 0x9000, scoped, tag = 'internal scratch']
  %s0 = inlined_call_operand.hbm [shape: f32[9], index: 0, kind: input, shape index: {}]
  %s1 = inlined_call_operand.hbm [shape: f32[2,24,256], index: 1, kind: input, shape index: {}]
  %s2 = inlined_call_operand.hbm [shape: f32[2,24,256], index: 2, kind: input, shape index: {}]
  %s3 = inlined_call_operand.hbm [shape: f32[2,16,128], index: 3, kind: output, shape index: {}]
  %s4 = sld [smem:[#allocation0]]
  $region57: #{tpu_custom_call.1} parent=0
    _
  %s6 = ssub.s32 1, %s4
  %s7 = scalar_select 0, %s6, %s4
  $region1: #{tpu_custom_call.1} parent=0
    #allocation2 [shape = 'u8[512]{0}', space=smem, size = 0x200, scoped, tag = 'input window, operand 0, single buffered']
    #allocation3 [shape = 's32[2]{0}', space=sflag, size = 0x8, scoped, tag = 'scoped memory for tpu_custom_call.1']
    #allocation4 [shape = 's32[2]{0}', space=sflag, size = 0x8, scoped, tag = 'scoped memory for tpu_custom_call.1']
    #allocation5 [shape = 's32[2]{0}', space=sflag, size = 0x8, scoped, tag = 'scoped memory for tpu_custom_call.1']
    #allocation6 [shape = 'u8[32768]{0}', space=vmem, size = 0x8000, scoped, tag = 'input window, operand 1']
    #allocation7 [shape = 'u8[16384]{0}', space=vmem, size = 0x4000, scoped, tag = 'input window, operand 2']
    #allocation8 [shape = 's32[2]{0}', space=sflag, size = 0x8, scoped, tag = 'scoped memory for tpu_custom_call.1']
    #allocation9 [shape = 'u8[16384]{0}', space=vmem, size = 0x4000, scoped, tag = 'output window, operand 0']
    %8 = vsyncpa [#allocation5], 0
    %9 = vsyncpa [#allocation3], 0
    %s10 = scalar_lea.sflag [#allocation3], 1
    %11 = vsyncpa %s10, 0
    %12 = vsyncpa [#allocation8], 0
    %s13 = scalar_lea.sflag [#allocation8], 1
    %14 = vsyncpa %s13, 0
    %15 = vsyncpa [#allocation4], 0
    %s16 = scalar_lea.sflag [#allocation4], 1
    %17 = vsyncpa %s16, 0
    loop: start=0, step=1, limit=4
    $region2: #{tpu_custom_call.1} parent=1 // loop_pre_header
      _
    $region3: #{tpu_custom_call.1} parent=1 // loop_header
      %s19 = sphi 0, %s23
      %p20 = scmp.ge.s32.totalorder %s19, 4
      %s26 = sphi 0, %s38
      %s27 = sphi 0, %s34
      %s28 = sphi 0, %s26
      %s29 = sphi 0, %s27
      %s30 = sphi 0, %s28
      %s31 = sphi 0, %s29
      %s39 = sphi 0, %s39
      %s41 = sphi 0, %s39
      %s42 = sphi 0, %s41
      %s56 = sphi 0, %s42
      %s64 = sphi 0, %s66
      %s67 = sphi 0, %s64
      %s68 = sphi 0, %s67
      %s84 = sphi 0, %s68
      %s96 = sphi 0, %s98
      %s99 = sphi 0, %s96
      %s100 = sphi 0, %s99
      %s116 = sphi 0, %s100
      %s124 = sphi 0, %s126
      %s127 = sphi 0, %s124
      %s128 = sphi 0, %s127
      %s144 = sphi 0, %s128
    $region4: #{tpu_custom_call.1} parent=1 // loop_header_branch
      %22 = sbr.rel (%p20) target = $region8
    $region5: #{tpu_custom_call.1} parent=1 // loop_body
      %s24 = ssub.s32 %s19, 1
      %s25 = ssub.s32 %s19, 2
      %s32 = sadd.s32 1, %s27
      %p33 = scmp.ge.s32.totalorder %s32, 1
      %s34 = scalar_select %p33, 0, %s32
      %s35 = sadd.s32 1, %s26
      %s36 = scalar_select %p33, %s35, %s26
      %p37 = scmp.ge.s32.totalorder %s36, 2
      %s38 = scalar_select %p37, 0, %s36
      %s40 = sadd.s32 %s39, 1
      %p43 = scmp.eq.s32.totalorder %s19, 1
      %p44 = scmp.ne.s32.totalorder %s39, %s41
      %p45 = scmp.eq.s32.totalorder %s19, 0
      %p46 = por %p44, %p45
      %p47 = scmp.ne.s32.totalorder %s39, %s41
      %p48 = scmp.eq.s32.totalorder %s24, 1
      %p49 = por %p47, %p48
      %p50 = scmp.ne.s32.totalorder %s41, %s42
      %p51 = scmp.eq.s32.totalorder %s24, 0
      %p52 = por %p50, %p51
      %p53 = scmp.ne.s32.totalorder %s41, %s42
      %p54 = scmp.eq.s32.totalorder %s25, 1
      %p55 = por %p53, %p54
      %p57 = scmp.ne.s32.totalorder %s42, %s56
      %p58 = scmp.eq.s32.totalorder %s25, 0
      %p59 = por %p57, %p58
      %s60 = ssub.s32 %s26, %s38
      %s61 = ssub.s32 %s27, %s34
      %s62 = sor.u32 %s60, %s61
      %p63 = scmp.eq.s32.totalorder %s62, 0
      %s65 = sadd.s32 %s64, 1
      %s66 = scalar_select %p63, %s64, %s65
      %p69 = pneg %p63
      %p70 = scmp.eq.s32.totalorder %s19, 1
      %p71 = por %p69, %p70
      %p72 = scmp.ne.s32.totalorder %s64, %s67
      %p73 = scmp.eq.s32.totalorder %s19, 0
      %p74 = por %p72, %p73
      %p75 = scmp.ne.s32.totalorder %s64, %s67
      %p76 = scmp.eq.s32.totalorder %s24, 1
      %p77 = por %p75, %p76
      %p78 = scmp.ne.s32.totalorder %s67, %s68
      %p79 = scmp.eq.s32.totalorder %s24, 0
      %p80 = por %p78, %p79
      %p81 = scmp.ne.s32.totalorder %s67, %s68
      %p82 = scmp.eq.s32.totalorder %s25, 1
      %p83 = por %p81, %p82
      %p85 = scmp.ne.s32.totalorder %s68, %s84
      %p86 = scmp.eq.s32.totalorder %s25, 0
      %p87 = por %p85, %p86
      %s88 = sadd.s32 %s27, 1
      %s89 = smul.u32 %s88, 2
      %s90 = sadd.s32 %s34, 1
      %s91 = smul.u32 %s90, 2
      %s92 = ssub.s32 %s26, %s38
      %s93 = ssub.s32 %s89, %s91
      %s94 = sor.u32 %s92, %s93
      %p95 = scmp.eq.s32.totalorder %s94, 0
      %s97 = sadd.s32 %s96, 1
      %s98 = scalar_select %p95, %s96, %s97
      %p101 = pneg %p95
      %p102 = scmp.eq.s32.totalorder %s19, 1
      %p103 = por %p101, %p102
      %p104 = scmp.ne.s32.totalorder %s96, %s99
      %p105 = scmp.eq.s32.totalorder %s19, 0
      %p106 = por %p104, %p105
      %p107 = scmp.ne.s32.totalorder %s96, %s99
      %p108 = scmp.eq.s32.totalorder %s24, 1
      %p109 = por %p107, %p108
      %p110 = scmp.ne.s32.totalorder %s99, %s100
      %p111 = scmp.eq.s32.totalorder %s24, 0
      %p112 = por %p110, %p111
      %p113 = scmp.ne.s32.totalorder %s99, %s100
      %p114 = scmp.eq.s32.totalorder %s25, 1
      %p115 = por %p113, %p114
      %p117 = scmp.ne.s32.totalorder %s100, %s116
      %p118 = scmp.eq.s32.totalorder %s25, 0
      %p119 = por %p117, %p118
      %s120 = ssub.s32 %s26, %s38
      %s121 = ssub.s32 %s27, %s34
      %s122 = sor.u32 %s120, %s121
      %p123 = scmp.eq.s32.totalorder %s122, 0
      %s125 = sadd.s32 %s124, 1
      %s126 = scalar_select %p123, %s124, %s125
      %p129 = pneg %p123
      %p130 = scmp.eq.s32.totalorder %s19, 1
      %p131 = por %p129, %p130
      %p132 = scmp.ne.s32.totalorder %s124, %s127
      %p133 = scmp.eq.s32.totalorder %s19, 0
      %p134 = por %p132, %p133
      %p135 = scmp.ne.s32.totalorder %s124, %s127
      %p136 = scmp.eq.s32.totalorder %s24, 1
      %p137 = por %p135, %p136
      %p138 = scmp.ne.s32.totalorder %s127, %s128
      %p139 = scmp.eq.s32.totalorder %s24, 0
      %p140 = por %p138, %p139
      %p141 = scmp.ne.s32.totalorder %s127, %s128
      %p142 = scmp.eq.s32.totalorder %s25, 1
      %p143 = por %p141, %p142
      %p145 = scmp.ne.s32.totalorder %s128, %s144
      %p146 = scmp.eq.s32.totalorder %s25, 0
      %p147 = por %p145, %p146
      %p148 = scmp.le.s32.totalorder 1, %s19
      %p149 = scmp.lt.s32.totalorder %s19, 3
      %p150 = pnand %p148, %p149
      %p151 = pneg %p150
      // Predicated region
      $region9: #{tpu_custom_call.1} parent=5 // pred_check
        _
      $region10: #{tpu_custom_call.1} parent=5 // pred_check_branch
        %153 = sbr.rel (%p150) target = $region12
      $region11: #{tpu_custom_call.1} parent=5 // pred_region
        %s154 = ssub.s32 %s19, 1
        // Predicated region
        $region13: #{tpu_custom_call.1} parent=11 // pred_check
          %p155 = pneg %p52
        $region14: #{tpu_custom_call.1} parent=11 // pred_check_branch
          %157 = sbr.rel (%p155) target = $region16
        $region15: #{tpu_custom_call.1} parent=11 // pred_region
          %159 = vsyncadd [#allocation5], 0
          %s161 = sshll.u32 %s0, 4
          %s162 = int_to_ptr.hbm [resolvable:$true] %s161
          %164 = dma.hbm_to_smem %s162, 16, [#allocation2], [#allocation5]
        $region16: #{tpu_custom_call.1} parent=11 // pred_fallthru
          _
      $region12: #{tpu_custom_call.1} parent=5 // pred_fallthru
        _
      %p165 = scmp.lt.s32.totalorder %s19, 2
      // Predicated region
      $region17: #{tpu_custom_call.1} parent=5 // pred_check
        %p166 = pneg %p165
      $region18: #{tpu_custom_call.1} parent=5 // pred_check_branch
        %168 = sbr.rel (%p166) target = $region20
      $region19: #{tpu_custom_call.1} parent=5 // pred_region
        // Predicated region
        $region21: #{tpu_custom_call.1} parent=19 // pred_check
          %p169 = pneg %p74
        $region22: #{tpu_custom_call.1} parent=19 // pred_check_branch
          %171 = sbr.rel (%p169) target = $region24
        $region23: #{tpu_custom_call.1} parent=19 // pred_region
          %s172 = sand.u32 %s64, 1
          %s173 = scalar_lea.sflag [#allocation3], %s172
          %s174 = sand.u32 %s64, 1
          %s175 = smul.addr %s174, 32
          %s176 = scalar_lea.vmem [#allocation6], %s175
          %s177 = smul.u32 2, %s27
          %s178 = ssub.s32 3, %s177
          %p179 = scmp.lt.s32.totalorder %s178, 2
          %s180 = scalar_select %p179, %s178, 2
          %s181 = smul.u32 8, %s180
          %s182 = smul.u32 %s181, 2
          %s183 = ssub.s32 32, %s182
          %s184 = sshll.u32 %s183, 4
          %185 = vsyncadd %s173, %s184
          %p186 = scmp.ne.s32.totalorder 0, %s182
          %s187 = smul.addr %s177, 2
          %s188 = smul.addr %s26, 6
          %s189 = sadd.s32 %s187, %s188
          %s190 = smul.addr %s189, 8
          %s191 = scalar_lea.hbm %s1, %s190
          %s192 = smul.u32 16, %s180
          %s193 = sshll.u32 %s191, 4
          %s194 = int_to_ptr.hbm [resolvable:$true] %s193
          %s195 = sshll.u32 %s176, 4
          %s196 = int_to_ptr.vmem [resolvable:$true] %s195
          %s197 = sshll.u32 %s192, 4
          %201 = dma.hbm_to_vmem [thread:$0]  (%p186), %s194, %s197, %s196, %s173, 256, 256, 16
        $region24: #{tpu_custom_call.1} parent=19 // pred_fallthru
          _
        // Predicated region
        $region25: #{tpu_custom_call.1} parent=19 // pred_check
          %p202 = pneg %p106
        $region26: #{tpu_custom_call.1} parent=19 // pred_check_branch
          %204 = sbr.rel (%p202) target = $region28
        $region27: #{tpu_custom_call.1} parent=19 // pred_region
          %s205 = sand.u32 %s96, 1
          %s206 = scalar_lea.sflag [#allocation8], %s205
          %s207 = sand.u32 %s96, 1
          %s208 = smul.addr %s207, 16
          %s209 = scalar_lea.vmem [#allocation7], %s208
          %s210 = sadd.s32 %s27, 1
          %s211 = smul.u32 %s210, 2
          %213 = vsyncadd %s206, 0
          %s214 = smul.addr %s211, 2
          %s215 = smul.addr %s26, 6
          %s216 = sadd.s32 %s214, %s215
          %s217 = smul.addr %s216, 8
          %s218 = scalar_lea.hbm %s2, %s217
          %s220 = sshll.u32 %s218, 4
          %s221 = int_to_ptr.hbm [resolvable:$true] %s220
          %s222 = sshll.u32 %s209, 4
          %s223 = int_to_ptr.vmem [resolvable:$true] %s222
          %225 = dma.hbm_to_vmem [thread:$0]  %s221, 256, %s223, %s206
        $region28: #{tpu_custom_call.1} parent=19 // pred_fallthru
          _
      $region20: #{tpu_custom_call.1} parent=5 // pred_fallthru
        _
      %p226 = scmp.le.s32.totalorder 1, %s19
      %p227 = scmp.lt.s32.totalorder %s19, 3
      %p228 = pnand %p226, %p227
      %p229 = pneg %p228
      // Predicated region
      $region29: #{tpu_custom_call.1} parent=5 // pred_check
        _
      $region30: #{tpu_custom_call.1} parent=5 // pred_check_branch
        %231 = sbr.rel (%p228) target = $region32
      $region31: #{tpu_custom_call.1} parent=5 // pred_region
        %s232 = ssub.s32 %s19, 1
        // Predicated region
        $region33: #{tpu_custom_call.1} parent=31 // pred_check
          %p233 = pneg %p52
        $region34: #{tpu_custom_call.1} parent=31 // pred_check_branch
          %235 = sbr.rel (%p233) target = $region36
        $region35: #{tpu_custom_call.1} parent=31 // pred_region
          %237 = dma.done [#allocation5], 16
        $region36: #{tpu_custom_call.1} parent=31 // pred_fallthru
          _
        %s238 = sand.u32 %s67, 1
        %s239 = scalar_lea.sflag [#allocation3], %s238
        %s240 = sand.u32 %s67, 1
        %s241 = smul.addr %s240, 32
        %s242 = scalar_lea.vmem [#allocation6], %s241
        // Predicated region
        $region37: #{tpu_custom_call.1} parent=31 // pred_check
          %p243 = pneg %p80
        $region38: #{tpu_custom_call.1} parent=31 // pred_check_branch
          %245 = sbr.rel (%p243) target = $region40
        $region39: #{tpu_custom_call.1} parent=31 // pred_region
          %247 = dma.done %s239, 512
        $region40: #{tpu_custom_call.1} parent=31 // pred_fallthru
          _
        %s248 = sand.u32 %s99, 1
        %s249 = scalar_lea.sflag [#allocation8], %s248
        %s250 = sand.u32 %s99, 1
        %s251 = smul.addr %s250, 16
        %s252 = scalar_lea.vmem [#allocation7], %s251
        // Predicated region
        $region41: #{tpu_custom_call.1} parent=31 // pred_check
          %p253 = pneg %p112
        $region42: #{tpu_custom_call.1} parent=31 // pred_check_branch
          %255 = sbr.rel (%p253) target = $region44
        $region43: #{tpu_custom_call.1} parent=31 // pred_region
          %257 = dma.done %s249, 256
        $region44: #{tpu_custom_call.1} parent=31 // pred_fallthru
          _
        %258 = sfence
        %p259 = pneg %p52
        %p260 = pneg %p49
        %s261 = sand.u32 %s67, 1
        %s262 = scalar_lea.sflag [#allocation3], %s261
        %s263 = sand.u32 %s67, 1
        %s264 = smul.addr %s263, 32
        %s265 = scalar_lea.vmem [#allocation6], %s264
        %p266 = pneg %p80
        %p267 = pneg %p77
        %s268 = sand.u32 %s99, 1
        %s269 = scalar_lea.sflag [#allocation8], %s268
        %s270 = sand.u32 %s99, 1
        %s271 = smul.addr %s270, 16
        %s272 = scalar_lea.vmem [#allocation7], %s271
        %p273 = pneg %p112
        %p274 = pneg %p109
        %p275 = pneg %p140
        %p276 = pneg %p137
        %s277 = sand.u32 %s127, 1
        %s278 = scalar_lea.sflag [#allocation4], %s277
        %s279 = sand.u32 %s127, 1
        %s280 = smul.addr %s279, 16
        %s281 = scalar_lea.vmem [#allocation9], %s280
        %s282 = smul.u32 2, %s29
        %s283 = ssub.s32 3, %s282
        %p284 = scmp.lt.s32.totalorder %s283, 2
        %s285 = scalar_select %p284, %s283, 2
        %s286 = smul.u32 8, %s285
        %s287 = smul.u32 %s286, 2
        %s288 = sadd.s32 %s29, 1
        %s289 = smul.u32 %s288, 2
        %s290 = smul.u32 2, %s29
        %v291 = vld [vmem:[%s242] sm:$0xff]
        %v292 = vld [vmem:[%s242 + $0x8] sm:$0xff]
        %v293 = vld [vmem:[%s242 + $0x10] sm:$0xff]
        %v294 = vld [vmem:[%s242 + $0x18] sm:$0xff]
        %v295 = vld [vmem:[%s252] sm:$0xff]
        %v296 = vld [vmem:[%s252 + $0x8] sm:$0xff]
        %s297 = sld [smem:[#allocation2]]
        %v298 = vstv %s297
        %v299 = vmul.f32 %v298, %v291
        %v300 = vmul.f32 %v298, %v293
        %v301 = vadd.f32 %v299, 0.0
        %v302 = vadd.f32 %v300, 0.0
        %s303 = sld [smem:[#allocation2 + $0x1]]
        %v304 = vstv %s303
        %v305 = vmul.f32 %v304, %v291
        %v306 = vmul.f32 %v304, %v292
        %v307 = vmul.f32 %v304, %v293
        %v308 = vmul.f32 %v304, %v294
        %313 = vrot.lane.b32.xlu0 %v305, 127
        %v314 = vpop.permute.xlu0 %313
        %315 = vrot.lane.b32.xlu0 %v306, 127
        %v316 = vpop.permute.xlu0 %315
        %317 = vrot.lane.b32.xlu0 %v307, 127
        %v318 = vpop.permute.xlu0 %317
        %319 = vrot.lane.b32.xlu0 %v308, 127
        %v320 = vpop.permute.xlu0 %319
        %vm321 = vcmask 1039360
        %v322 = vsel %vm321, %v314, %v316
        %v323 = vsel %vm321, %v318, %v320
        %v326 = vadd.f32 %v301, %v322
        %v327 = vadd.f32 %v302, %v323
        %s328 = sld [smem:[#allocation2 + $0x2]]
        %v329 = vstv %s328
        %v330 = vmul.f32 %v329, %v291
        %v331 = vmul.f32 %v329, %v292
        %v332 = vmul.f32 %v329, %v293
        %v333 = vmul.f32 %v329, %v294
        %338 = vrot.lane.b32.xlu0 %v330, 126
        %v339 = vpop.permute.xlu0 %338
        %340 = vrot.lane.b32.xlu0 %v331, 126
        %v341 = vpop.permute.xlu0 %340
        %342 = vrot.lane.b32.xlu0 %v332, 126
        %v343 = vpop.permute.xlu0 %342
        %344 = vrot.lane.b32.xlu0 %v333, 126
        %v345 = vpop.permute.xlu0 %344
        %vm346 = vcmask 1031168
        %v347 = vsel %vm346, %v339, %v341
        %v348 = vsel %vm346, %v343, %v345
        %v351 = vadd.f32 %v326, %v347
        %v352 = vadd.f32 %v327, %v348
        %s353 = sld [smem:[#allocation2 + $0x3]]
        %v354 = vstv %s353
        %v355 = vmul.f32 %v354, %v291
        %v356 = vmul.f32 %v354, %v293
        %v357 = vmul.f32 %v354, %v295
        %vm361 = vcmask 1046528
        %v362 = vrot.slane %v355, 1
        %v363 = vrot.slane %v356, 1
        %v364 = vsel %vm361, %v362, %v363
        %v365 = vrot.slane %v357, 1
        %v366 = vsel %vm361, %v363, %v365
        %v369 = vadd.f32 %v351, %v364
        %v370 = vadd.f32 %v352, %v366
        %s371 = sld [smem:[#allocation2 + $0x4]]
        %v372 = vstv %s371
        %v373 = vmul.f32 %v372, %v291
        %v374 = vmul.f32 %v372, %v292
        %v375 = vmul.f32 %v372, %v293
        %v376 = vmul.f32 %v372, %v294
        %v377 = vmul.f32 %v372, %v295
        %v378 = vmul.f32 %v372, %v296
        %v385 = vrot.slane %v373, 1
        %v386 = vrot.slane %v375, 1
        %v387 = vsel %vm361, %v385, %v386
        %v388 = vrot.slane %v374, 1
        %v389 = vrot.slane %v376, 1
        %v390 = vsel %vm361, %v388, %v389
        %v391 = vrot.slane %v377, 1
        %v392 = vsel %vm361, %v386, %v391
        %v393 = vrot.slane %v378, 1
        %v394 = vsel %vm361, %v389, %v393
        %395 = vrot.lane.b32.xlu0 %v387, 127
        %v396 = vpop.permute.xlu0 %395
        %397 = vrot.lane.b32.xlu0 %v390, 127
        %v398 = vpop.permute.xlu0 %397
        %399 = vrot.lane.b32.xlu0 %v392, 127
        %v400 = vpop.permute.xlu0 %399
        %401 = vrot.lane.b32.xlu0 %v394, 127
        %v402 = vpop.permute.xlu0 %401
        %v403 = vsel %vm321, %v396, %v398
        %v404 = vsel %vm321, %v400, %v402
        %v407 = vadd.f32 %v369, %v403
        %v408 = vadd.f32 %v370, %v404
        %s409 = sld [smem:[#allocation2 + $0x5]]
        %v410 = vstv %s409
        %v411 = vmul.f32 %v410, %v291
        %v412 = vmul.f32 %v410, %v292
        %v413 = vmul.f32 %v410, %v293
        %v414 = vmul.f32 %v410, %v294
        %v415 = vmul.f32 %v410, %v295
        %v416 = vmul.f32 %v410, %v296
        %v423 = vrot.slane %v411, 1
        %v424 = vrot.slane %v413, 1
        %v425 = vsel %vm361, %v423, %v424
        %v426 = vrot.slane %v412, 1
        %v427 = vrot.slane %v414, 1
        %v428 = vsel %vm361, %v426, %v427
        %v429 = vrot.slane %v415, 1
        %v430 = vsel %vm361, %v424, %v429
        %v431 = vrot.slane %v416, 1
        %v432 = vsel %vm361, %v427, %v431
        %433 = vrot.lane.b32.xlu0 %v425, 126
        %v434 = vpop.permute.xlu0 %433
        %435 = vrot.lane.b32.xlu0 %v428, 126
        %v436 = vpop.permute.xlu0 %435
        %437 = vrot.lane.b32.xlu0 %v430, 126
        %v438 = vpop.permute.xlu0 %437
        %439 = vrot.lane.b32.xlu0 %v432, 126
        %v440 = vpop.permute.xlu0 %439
        %v441 = vsel %vm346, %v434, %v436
        %v442 = vsel %vm346, %v438, %v440
        %v445 = vadd.f32 %v407, %v441
        %v446 = vadd.f32 %v408, %v442
        %s447 = sld [smem:[#allocation2 + $0x6]]
        %v448 = vstv %s447
        %v449 = vmul.f32 %v448, %v291
        %v450 = vmul.f32 %v448, %v293
        %v451 = vmul.f32 %v448, %v295
        %vm455 = vcmask 1045504
        %v456 = vrot.slane %v449, 2
        %v457 = vrot.slane %v450, 2
        %v458 = vsel %vm455, %v456, %v457
        %v459 = vrot.slane %v451, 2
        %v460 = vsel %vm455, %v457, %v459
        %v463 = vadd.f32 %v445, %v458
        %v464 = vadd.f32 %v446, %v460
        %s465 = sld [smem:[#allocation2 + $0x7]]
        %v466 = vstv %s465
        %v467 = vmul.f32 %v466, %v291
        %v468 = vmul.f32 %v466, %v292
        %v469 = vmul.f32 %v466, %v293
        %v470 = vmul.f32 %v466, %v294
        %v471 = vmul.f32 %v466, %v295
        %v472 = vmul.f32 %v466, %v296
        %v479 = vrot.slane %v467, 2
        %v480 = vrot.slane %v469, 2
        %v481 = vsel %vm455, %v479, %v480
        %v482 = vrot.slane %v468, 2
        %v483 = vrot.slane %v470, 2
        %v484 = vsel %vm455, %v482, %v483
        %v485 = vrot.slane %v471, 2
        %v486 = vsel %vm455, %v480, %v485
        %v487 = vrot.slane %v472, 2
        %v488 = vsel %vm455, %v483, %v487
        %489 = vrot.lane.b32.xlu0 %v481, 127
        %v490 = vpop.permute.xlu0 %489
        %491 = vrot.lane.b32.xlu0 %v484, 127
        %v492 = vpop.permute.xlu0 %491
        %493 = vrot.lane.b32.xlu0 %v486, 127
        %v494 = vpop.permute.xlu0 %493
        %495 = vrot.lane.b32.xlu0 %v488, 127
        %v496 = vpop.permute.xlu0 %495
        %v497 = vsel %vm321, %v490, %v492
        %v498 = vsel %vm321, %v494, %v496
        %v501 = vadd.f32 %v463, %v497
        %v502 = vadd.f32 %v464, %v498
        %s503 = sld [smem:[#allocation2 + $0x8]]
        %v504 = vstv %s503
        %v505 = vmul.f32 %v504, %v291
        %v506 = vmul.f32 %v504, %v292
        %v507 = vmul.f32 %v504, %v293
        %v508 = vmul.f32 %v504, %v294
        %v509 = vmul.f32 %v504, %v295
        %v510 = vmul.f32 %v504, %v296
        %v517 = vrot.slane %v505, 2
        %v518 = vrot.slane %v507, 2
        %v519 = vsel %vm455, %v517, %v518
        %v520 = vrot.slane %v506, 2
        %v521 = vrot.slane %v508, 2
        %v522 = vsel %vm455, %v520, %v521
        %v523 = vrot.slane %v509, 2
        %v524 = vsel %vm455, %v518, %v523
        %v525 = vrot.slane %v510, 2
        %v526 = vsel %vm455, %v521, %v525
        %527 = vrot.lane.b32.xlu0 %v519, 126
        %v528 = vpop.permute.xlu0 %527
        %529 = vrot.lane.b32.xlu0 %v522, 126
        %v530 = vpop.permute.xlu0 %529
        %531 = vrot.lane.b32.xlu0 %v524, 126
        %v532 = vpop.permute.xlu0 %531
        %533 = vrot.lane.b32.xlu0 %v526, 126
        %v534 = vpop.permute.xlu0 %533
        %v535 = vsel %vm346, %v528, %v530
        %v536 = vsel %vm346, %v532, %v534
        %v539 = vadd.f32 %v501, %v535
        %v540 = vadd.f32 %v502, %v536
        %541 = vst [vmem:[%s281] sm:$0xff] %v539
        %542 = vst [vmem:[%s281 + $0x8] sm:$0xff] %v540
        %s543 = sand.u32 %s127, 1
        %s544 = scalar_lea.sflag [#allocation4], %s543
        %s545 = sand.u32 %s127, 1
        %s546 = smul.addr %s545, 16
        %s547 = scalar_lea.vmem [#allocation9], %s546
        // Predicated region
        $region45: #{tpu_custom_call.1} parent=31 // pred_check
          %p548 = pneg %p137
        $region46: #{tpu_custom_call.1} parent=31 // pred_check_branch
          %550 = sbr.rel (%p548) target = $region48
        $region47: #{tpu_custom_call.1} parent=31 // pred_region
          %s551 = smul.u32 2, %s29
          %553 = vsyncadd %s544, 0
          %s554 = smul.addr %s28, 2
          %s555 = sadd.s32 %s551, %s554
          %s556 = smul.addr %s555, 8
          %s557 = scalar_lea.hbm %s3, %s556
          %s558 = sshll.u32 %s547, 4
          %s559 = int_to_ptr.vmem [resolvable:$true] %s558
          %s560 = sshll.u32 %s557, 4
          %s561 = int_to_ptr.hbm [resolvable:$true] %s560
          %566 = dma.vmem_to_hbm [thread:$0]  %s559, 256, %s561, %s544, 128, 128, 8
        $region48: #{tpu_custom_call.1} parent=31 // pred_fallthru
          _
      $region32: #{tpu_custom_call.1} parent=5 // pred_fallthru
        _
      %p567 = scmp.le.s32.totalorder 2, %s19
      // Predicated region
      $region49: #{tpu_custom_call.1} parent=5 // pred_check
        %p568 = pneg %p567
      $region50: #{tpu_custom_call.1} parent=5 // pred_check_branch
        %570 = sbr.rel (%p568) target = $region52
      $region51: #{tpu_custom_call.1} parent=5 // pred_region
        %s571 = ssub.s32 %s19, 2
        // Predicated region
        $region53: #{tpu_custom_call.1} parent=51 // pred_check
          %p572 = pneg %p143
        $region54: #{tpu_custom_call.1} parent=51 // pred_check_branch
          %574 = sbr.rel (%p572) target = $region56
        $region55: #{tpu_custom_call.1} parent=51 // pred_region
          %s575 = sand.u32 %s128, 1
          %s576 = scalar_lea.sflag [#allocation4], %s575
          %s577 = sand.u32 %s128, 1
          %s578 = smul.addr %s577, 16
          %s579 = scalar_lea.vmem [#allocation9], %s578
          %581 = dma.done %s576, 256
        $region56: #{tpu_custom_call.1} parent=51 // pred_fallthru
          _
      $region52: #{tpu_custom_call.1} parent=5 // pred_fallthru
        _
    $region6: #{tpu_custom_call.1} parent=1 // loop_footer
      %s23 = sadd.s32 1, %s19
    $region7: #{tpu_custom_call.1} parent=1 // loop_footer_branch
      %18 = sbr.rel target = $region3
    $region8: #{tpu_custom_call.1} parent=1 // loop_exit
      _
    %582 = vsyncpa [#allocation3], 1
    %s583 = scalar_lea.sflag [#allocation3], 1
    %584 = vsyncpa %s583, 1
    %585 = vsyncpa [#allocation8], 1
    %s586 = scalar_lea.sflag [#allocation8], 1
    %587 = vsyncpa %s586, 1
    %588 = vsyncpa [#allocation4], 1
    %s589 = scalar_lea.sflag [#allocation4], 1
    %590 = vsyncpa %s589, 1
    %591 = vsyncpa [#allocation5], 1
    %s592 = scalar_lea.sflag [#allocation5], 1
    %593 = vsyncpa %s592, 1

</llo_original>
